<compile_context>
chip_gen: v7x
topology: tpu7x:2x2x1
jax: 0.10.0
libtpu: 0.0.40
codegen_flags: <defaults>
</compile_context>

<pallas_src>
import math

import jax
import jax.numpy as jnp
from jax.experimental import pallas as pl
from jax.experimental.pallas import tpu as pltpu


def _round_up(v, m):
    return -(-v // m) * m


def _softmax_lastdim(z):
    # F.softmax(x, dim=1) on a (rows, F) tensor == softmax over the last dim.
    m = jnp.max(z, axis=-1, keepdims=True)
    e = jnp.exp(z - m)
    # approx reciprocal runs on the EUP slot (off the VPU critical path);
    # rel. error ~1e-4, inside the test tolerance below.
    return e * pl.reciprocal(jnp.sum(e, axis=-1, keepdims=True), approx=True)


def mlp_kernel(x_ref,                     # (2, TILE_B, D_IN) both packages, bf16
               w0_ref, b0_ref,            # (D_IN, H0) bf16, (1, H0) f32
               w1_ref, b1_ref,            # (H0, H1)  bf16, (1, H1) f32
               w2_ref, b2_ref,            # (H1, 2*C) bf16 = [w2a | w2b], (1, C) f32
               aux_ref, out_ref):         # (2, TILE_B, H1) f32, (TILE_B, C) f32
    tb = x_ref.shape[1]
    d_in = x_ref.shape[2]
    c = out_ref.shape[-1]

    # Fuse the two packages: one (2*TILE_B, D_IN) matmul per layer.
    x2 = x_ref[...].reshape(2 * tb, d_in)

    # bf16 MXU inputs, f32 accumulation; bias-add / ReLU / softmax in f32.
    h = jnp.dot(x2, w0_ref[...], preferred_element_type=jnp.float32) + b0_ref[...]
    h = jnp.maximum(h, 0.0)                               # actfunc_inlayer = ReLU
    h = jnp.dot(h.astype(w1_ref.dtype), w1_ref[...],
                preferred_element_type=jnp.float32) + b1_ref[...]
    h = jnp.maximum(h, 0.0)                               # actfunc_hidlayers[0] = ReLU

    # Auxiliary outputs (actfunc_auxoutlayers = SoftMax) — single slab store.
    aux_ref[...] = _softmax_lastdim(h).reshape(aux_ref.shape)

    # Shared output layer on the concat:  cat([h0, h1], dim=1) @ W2.T + b2
    # == h0 @ w2a + h1 @ w2b + b2.  w2_ref is the pre-fused [w2a | w2b], so
    # this is ONE (2*TILE_B, 2C) matmul plus a lane-offset add — no lane-axis
    # concatenate, no second MXU pipeline fill.
    y = jnp.dot(h.astype(w2_ref.dtype), w2_ref[...],
                preferred_element_type=jnp.float32)
    logits = y[:tb, :c] + y[tb:, c:] + b2_ref[...]
    logits = jnp.maximum(logits, 0.0)                     # actfunc_hidlayers[-1] = ReLU
    out_ref[...] = _softmax_lastdim(logits)               # actfunc_outlayer = SoftMax


def prepare_params(params, compute_dtype=jnp.bfloat16):
    """One-time glue: transpose PyTorch (out, in) weights, pre-split+fuse w2 to
    [w2a | w2b], reshape biases, cast matmul operands to the compute dtype."""
    (w0, b0), (w1, b1), (w2, b2) = params
    H1 = w1.shape[0]
    w2cat = jnp.concatenate([w2[:, :H1].T, w2[:, H1:].T], axis=1)   # (H1, 2C)
    return dict(
        w0t=w0.T.astype(compute_dtype), b0=b0[None, :].astype(jnp.float32),
        w1t=w1.T.astype(compute_dtype), b1=b1[None, :].astype(jnp.float32),
        w2cat=w2cat.astype(compute_dtype), b2=b2[None, :].astype(jnp.float32),
    )


def _pick_tile_b(B, cap=2048):
    """Tile selection without the divisor cliff.

    Returns the largest multiple-of-8 tile <= cap such that the batch (rounded
    up to a sublane multiple) splits into >= 2 grid steps whenever B >= 16
    (so the "parallel" grid axis can shard across both v7x TensorCores).  The
    wrapper pads B up to a tile multiple, so any batch size is supported with
    at most one partially-garbage tail tile.
    """
    b8 = _round_up(B, 8)
    if b8 <= 8:
        return 8
    nb = max(2, -(-b8 // cap))                 # number of grid steps
    return _round_up(-(-b8 // nb), 8)          # ceil(b8/nb), multiple of 8


@jax.jit
def mlp_forward(x, p):
    """x: (2, B, D_IN) — two data packages.  Returns ([aux0, aux1], out)."""
    npack, B, D_IN = x.shape
    assert npack == 2
    H0 = p["w0t"].shape[1]
    H1 = p["w1t"].shape[1]
    C = p["b2"].shape[1]

    TILE_B = _pick_tile_b(B)
    nb = _round_up(B, TILE_B) // TILE_B
    B_pad = nb * TILE_B

    cdt = p["w0t"].dtype
    xc = x if x.dtype == cdt else x.astype(cdt)   # free if the pipeline already feeds bf16
    if B_pad != B:
        xc = jnp.pad(xc, ((0, 0), (0, B_pad - B), (0, 0)))

    full = lambda i: (0, 0)
    fn = pl.pallas_call(
        mlp_kernel,
        grid=(nb,),
        in_specs=[
            pl.BlockSpec((2, TILE_B, D_IN), lambda i: (0, i, 0)),   # x (both packages)
            pl.BlockSpec((D_IN, H0), full), pl.BlockSpec((1, H0), full),
            pl.BlockSpec((H0, H1), full),   pl.BlockSpec((1, H1), full),
            pl.BlockSpec((H1, 2 * C), full), pl.BlockSpec((1, C), full),
        ],
        out_specs=(
            pl.BlockSpec((2, TILE_B, H1), lambda i: (0, i, 0)),     # aux slab
            pl.BlockSpec((TILE_B, C), lambda i: (i, 0)),            # final softmax
        ),
        out_shape=(
            jax.ShapeDtypeStruct((2, B_pad, H1), jnp.float32),
            jax.ShapeDtypeStruct((B_pad, C), jnp.float32),
        ),
        compiler_params=pltpu.CompilerParams(
            dimension_semantics=("parallel",),
            vmem_limit_bytes=32 * 1024 * 1024),
    )
    aux, out = fn(xc, p["w0t"], p["b0"], p["w1t"], p["b1"], p["w2cat"], p["b2"])
    # Drop the padded tail rows (a no-op when B is already a tile multiple).
    return [aux[0, :B], aux[1, :B]], out[:B]


def _torch_linear_init(key, out_f, in_f):
    # deterministic, PyTorch-default-style init: U(-1/sqrt(in), 1/sqrt(in))
    kw, kb = jax.random.split(key)
    bound = 1.0 / math.sqrt(in_f)
    w = jax.random.uniform(kw, (out_f, in_f), jnp.float32, -bound, bound)
    b = jax.random.uniform(kb, (out_f,), jnp.float32, -bound, bound)
    return w, b


def _reference(x, params):
    (w0, b0), (w1, b1), (w2, b2) = params

    def sub(xi):
        h = jnp.maximum(xi @ w0.T + b0, 0.0)
        h = jnp.maximum(h @ w1.T + b1, 0.0)
        return h

    h0, h1 = sub(x[0]), sub(x[1])
    aux0 = jax.nn.softmax(h0, axis=1)
    aux1 = jax.nn.softmax(h1, axis=1)
    cat = jnp.concatenate([h0, h1], axis=1)
    out = jax.nn.softmax(jnp.maximum(cat @ w2.T + b2, 0.0), axis=1)
    return [aux0, aux1], out


if __name__ == "__main__":
    B, D_IN, H0, H1, C = 8, 128, 64, 32, 2

    key = jax.random.PRNGKey(0)
    kx, kx2, k0, k1, k2 = jax.random.split(key, 5)

    # two data packages, each (B, D_IN)
    x = jax.random.normal(kx, (2, B, D_IN), jnp.float32)

    params = [
        _torch_linear_init(k0, H0, D_IN),   # input layer (shared via weightsharing)
        _torch_linear_init(k1, H1, H0),     # hidden layer 0
        _torch_linear_init(k2, C, 2 * H1),  # shared output layer on concat
    ]
    prepped = prepare_params(params)        # hoisted one-time weight glue (bf16)

    (aux0, aux1), out = mlp_forward(x, prepped)
    jax.block_until_ready(out)

    # Reference: same math in plain f32 JAX, fed the bf16-rounded x / weights
    # the kernel actually consumes, so the check isolates kernel correctness
    # from the intentional bf16 input quantization.  Remaining differences are
    # the in-kernel bf16 casts of the hidden activations and the EUP approx
    # reciprocal in the softmaxes (both << tolerance on probability outputs).
    rparams = [(w.astype(jnp.bfloat16).astype(jnp.float32), b) for (w, b) in params]
    xr = x.astype(jnp.bfloat16).astype(jnp.float32)
    (raux0, raux1), rout = _reference(xr, rparams)
    assert jnp.allclose(aux0, raux0, atol=5e-3, rtol=5e-3)
    assert jnp.allclose(aux1, raux1, atol=5e-3, rtol=5e-3)
    assert jnp.allclose(out, rout, atol=5e-3, rtol=5e-3)

    # Also exercise the padded / multi-step-grid path (B not a tile multiple).
    B2 = 12
    xb = jax.random.normal(kx2, (2, B2, D_IN), jnp.float32)
    (baux0, baux1), bout = mlp_forward(xb, prepped)
    jax.block_until_ready(bout)
    xbr = xb.astype(jnp.bfloat16).astype(jnp.float32)
    (rbaux0, rbaux1), rbout = _reference(xbr, rparams)
    assert baux0.shape == (B2, H1) and bout.shape == (B2, C)
    assert jnp.allclose(baux0, rbaux0, atol=5e-3, rtol=5e-3)
    assert jnp.allclose(baux1, rbaux1, atol=5e-3, rtol=5e-3)
    assert jnp.allclose(bout, rbout, atol=5e-3, rtol=5e-3)

    print("KERNEL_OK")
</pallas_src>

<mosaic_0001>
module attributes {stable_mosaic.version = 11 : i64} {
  func.func @mlp_kernel(%arg0: i32, %arg1: memref<2x8x128xbf16, #tpu.memory_space<vmem>>, %arg2: memref<128x64xbf16, #tpu.memory_space<vmem>>, %arg3: memref<1x64xf32, #tpu.memory_space<vmem>>, %arg4: memref<64x32xbf16, #tpu.memory_space<vmem>>, %arg5: memref<1x32xf32, #tpu.memory_space<vmem>>, %arg6: memref<32x4xbf16, #tpu.memory_space<vmem>>, %arg7: memref<1x2xf32, #tpu.memory_space<vmem>>, %arg8: memref<2x8x32xf32, #tpu.memory_space<vmem>>, %arg9: memref<8x2xf32, #tpu.memory_space<vmem>>) attributes {dimension_semantics = [#tpu.dimension_semantics<parallel>], iteration_bounds = array<i64: 1>, scalar_prefetch = 0 : i64, scratch_operands = 0 : i64, tpu.core_type = #tpu.core_type<tc>, window_params = [{transform_indices = @transform_0, window_bounds = array<i64: 2, 8, 128>}, {pipeline_mode = #tpu.pipeline_mode<synchronous>, transform_indices = @transform_1, window_bounds = array<i64: 128, 64>}, {pipeline_mode = #tpu.pipeline_mode<synchronous>, transform_indices = @transform_2, window_bounds = array<i64: 1, 64>}, {pipeline_mode = #tpu.pipeline_mode<synchronous>, transform_indices = @transform_3, window_bounds = array<i64: 64, 32>}, {pipeline_mode = #tpu.pipeline_mode<synchronous>, transform_indices = @transform_4, window_bounds = array<i64: 1, 32>}, {pipeline_mode = #tpu.pipeline_mode<synchronous>, transform_indices = @transform_5, window_bounds = array<i64: 32, 4>}, {pipeline_mode = #tpu.pipeline_mode<synchronous>, transform_indices = @transform_6, window_bounds = array<i64: 1, 2>}, {transform_indices = @transform_7, window_bounds = array<i64: 2, 8, 32>}, {transform_indices = @transform_8, window_bounds = array<i64: 8, 2>}]} {
    %c0 = arith.constant 0 : index
    %c0_0 = arith.constant 0 : index
    %c0_1 = arith.constant 0 : index
    %0 = vector.load %arg1[%c0, %c0_0, %c0_1] : memref<2x8x128xbf16, #tpu.memory_space<vmem>>, vector<2x8x128xbf16>
    %1 = vector.shape_cast %0 : vector<2x8x128xbf16> to vector<16x128xbf16>
    %c0_2 = arith.constant 0 : index
    %c0_3 = arith.constant 0 : index
    %2 = vector.load %arg2[%c0_2, %c0_3] : memref<128x64xbf16, #tpu.memory_space<vmem>>, vector<128x64xbf16>
    %cst = arith.constant dense<0.000000e+00> : vector<16x64xf32>
    %3 = tpu.matmul %1, %2, %cst {dimension_numbers = #tpu.dot_dimension_numbers<[1], [0], [0], [1], [0, 0, 1, 1], [], []>} : vector<16x128xbf16>, vector<128x64xbf16>, vector<16x64xf32> -> vector<16x64xf32>
    %c0_4 = arith.constant 0 : index
    %c0_5 = arith.constant 0 : index
    %4 = vector.load %arg3[%c0_4, %c0_5] : memref<1x64xf32, #tpu.memory_space<vmem>>, vector<1x64xf32>
    %5 = vector.broadcast %4 : vector<1x64xf32> to vector<16x64xf32>
    %6 = arith.addf %3, %5 : vector<16x64xf32>
    %cst_6 = arith.constant 0.000000e+00 : f32
    %7 = vector.broadcast %cst_6 : f32 to vector<16x64xf32>
    %8 = arith.maximumf %6, %7 : vector<16x64xf32>
    %9 = arith.truncf %8 : vector<16x64xf32> to vector<16x64xbf16>
    %c0_7 = arith.constant 0 : index
    %c0_8 = arith.constant 0 : index
    %10 = vector.load %arg4[%c0_7, %c0_8] : memref<64x32xbf16, #tpu.memory_space<vmem>>, vector<64x32xbf16>
    %cst_9 = arith.constant dense<0.000000e+00> : vector<16x32xf32>
    %11 = tpu.matmul %9, %10, %cst_9 {dimension_numbers = #tpu.dot_dimension_numbers<[1], [0], [0], [1], [0, 0, 1, 1], [], []>} : vector<16x64xbf16>, vector<64x32xbf16>, vector<16x32xf32> -> vector<16x32xf32>
    %c0_10 = arith.constant 0 : index
    %c0_11 = arith.constant 0 : index
    %12 = vector.load %arg5[%c0_10, %c0_11] : memref<1x32xf32, #tpu.memory_space<vmem>>, vector<1x32xf32>
    %13 = vector.broadcast %12 : vector<1x32xf32> to vector<16x32xf32>
    %14 = arith.addf %11, %13 : vector<16x32xf32>
    %cst_12 = arith.constant 0.000000e+00 : f32
    %15 = vector.broadcast %cst_12 : f32 to vector<16x32xf32>
    %16 = arith.maximumf %14, %15 : vector<16x32xf32>
    %cst_13 = arith.constant dense<0xFF800000> : vector<16xf32>
    %17 = vector.multi_reduction <maximumf>, %16, %cst_13 [1] : vector<16x32xf32> to vector<16xf32>
    %18 = vector.shape_cast %17 : vector<16xf32> to vector<16x1xf32>
    %19 = vector.broadcast %18 : vector<16x1xf32> to vector<16x32xf32>
    %20 = arith.subf %16, %19 : vector<16x32xf32>
    %21 = math.exp %20 : vector<16x32xf32>
    %cst_14 = arith.constant dense<0.000000e+00> : vector<16xf32>
    %22 = vector.multi_reduction <add>, %21, %cst_14 [1] : vector<16x32xf32> to vector<16xf32>
    %23 = vector.shape_cast %22 : vector<16xf32> to vector<16x1xf32>
    %24 = tpu.reciprocal %23 {approx = true} : vector<16x1xf32> -> vector<16x1xf32>
    %25 = vector.broadcast %24 : vector<16x1xf32> to vector<16x32xf32>
    %26 = arith.mulf %21, %25 : vector<16x32xf32>
    %27 = vector.shape_cast %26 : vector<16x32xf32> to vector<2x8x32xf32>
    %c0_15 = arith.constant 0 : index
    %c0_16 = arith.constant 0 : index
    %c0_17 = arith.constant 0 : index
    %28 = vector.load %arg8[%c0_15, %c0_16, %c0_17] : memref<2x8x32xf32, #tpu.memory_space<vmem>>, vector<2x8x32xf32>
    tpu.vector_store %arg8[%c0_15, %c0_16, %c0_17], %27 {strides = array<i32>} : memref<2x8x32xf32, #tpu.memory_space<vmem>>, vector<2x8x32xf32>,
    %29 = arith.truncf %16 : vector<16x32xf32> to vector<16x32xbf16>
    %c0_18 = arith.constant 0 : index
    %c0_19 = arith.constant 0 : index
    %30 = vector.load %arg6[%c0_18, %c0_19] : memref<32x4xbf16, #tpu.memory_space<vmem>>, vector<32x4xbf16>
    %cst_20 = arith.constant dense<0.000000e+00> : vector<16x4xf32>
    %31 = tpu.matmul %29, %30, %cst_20 {dimension_numbers = #tpu.dot_dimension_numbers<[1], [0], [0], [1], [0, 0, 1, 1], [], []>} : vector<16x32xbf16>, vector<32x4xbf16>, vector<16x4xf32> -> vector<16x4xf32>
    %32 = vector.extract_strided_slice %31 {offsets = [0, 0], sizes = [8, 2], strides = [1, 1]} : vector<16x4xf32> to vector<8x2xf32>
    %33 = vector.extract_strided_slice %31 {offsets = [8, 2], sizes = [8, 2], strides = [1, 1]} : vector<16x4xf32> to vector<8x2xf32>
    %34 = arith.addf %32, %33 : vector<8x2xf32>
    %c0_21 = arith.constant 0 : index
    %c0_22 = arith.constant 0 : index
    %35 = vector.load %arg7[%c0_21, %c0_22] : memref<1x2xf32, #tpu.memory_space<vmem>>, vector<1x2xf32>
    %36 = vector.broadcast %35 : vector<1x2xf32> to vector<8x2xf32>
    %37 = arith.addf %34, %36 : vector<8x2xf32>
    %cst_23 = arith.constant 0.000000e+00 : f32
    %38 = vector.broadcast %cst_23 : f32 to vector<8x2xf32>
    %39 = arith.maximumf %37, %38 : vector<8x2xf32>
    %cst_24 = arith.constant dense<0xFF800000> : vector<8xf32>
    %40 = vector.multi_reduction <maximumf>, %39, %cst_24 [1] : vector<8x2xf32> to vector<8xf32>
    %41 = vector.shape_cast %40 : vector<8xf32> to vector<8x1xf32>
    %42 = vector.broadcast %41 : vector<8x1xf32> to vector<8x2xf32>
    %43 = arith.subf %39, %42 : vector<8x2xf32>
    %44 = math.exp %43 : vector<8x2xf32>
    %cst_25 = arith.constant dense<0.000000e+00> : vector<8xf32>
    %45 = vector.multi_reduction <add>, %44, %cst_25 [1] : vector<8x2xf32> to vector<8xf32>
    %46 = vector.shape_cast %45 : vector<8xf32> to vector<8x1xf32>
    %47 = tpu.reciprocal %46 {approx = true} : vector<8x1xf32> -> vector<8x1xf32>
    %48 = vector.broadcast %47 : vector<8x1xf32> to vector<8x2xf32>
    %49 = arith.mulf %44, %48 : vector<8x2xf32>
    %c0_26 = arith.constant 0 : index
    %c0_27 = arith.constant 0 : index
    %50 = vector.load %arg9[%c0_26, %c0_27] : memref<8x2xf32, #tpu.memory_space<vmem>>, vector<8x2xf32>
    tpu.vector_store %arg9[%c0_26, %c0_27], %49 {strides = array<i32>} : memref<8x2xf32, #tpu.memory_space<vmem>>, vector<8x2xf32>,
    return
  }
  func.func @transform_0(%arg0: i32) -> (i32, i32, i32) {
    %c0_i32 = arith.constant 0 : i32
    %c0_i32_0 = arith.constant 0 : i32
    %c0_i32_1 = arith.constant 0 : i32
    return %c0_i32, %arg0, %c0_i32_0 : i32, i32, i32
  }
  func.func @transform_1(%arg0: i32) -> (i32, i32) {
    %c0_i32 = arith.constant 0 : i32
    %c0_i32_0 = arith.constant 0 : i32
    %c0_i32_1 = arith.constant 0 : i32
    return %c0_i32, %c0_i32_0 : i32, i32
  }
  func.func @transform_2(%arg0: i32) -> (i32, i32) {
    %c0_i32 = arith.constant 0 : i32
    %c0_i32_0 = arith.constant 0 : i32
    %c0_i32_1 = arith.constant 0 : i32
    return %c0_i32, %c0_i32_0 : i32, i32
  }
  func.func @transform_3(%arg0: i32) -> (i32, i32) {
    %c0_i32 = arith.constant 0 : i32
    %c0_i32_0 = arith.constant 0 : i32
    %c0_i32_1 = arith.constant 0 : i32
    return %c0_i32, %c0_i32_0 : i32, i32
  }
  func.func @transform_4(%arg0: i32) -> (i32, i32) {
    %c0_i32 = arith.constant 0 : i32
    %c0_i32_0 = arith.constant 0 : i32
    %c0_i32_1 = arith.constant 0 : i32
    return %c0_i32, %c0_i32_0 : i32, i32
  }
  func.func @transform_5(%arg0: i32) -> (i32, i32) {
    %c0_i32 = arith.constant 0 : i32
    %c0_i32_0 = arith.constant 0 : i32
    %c0_i32_1 = arith.constant 0 : i32
    return %c0_i32, %c0_i32_0 : i32, i32
  }
  func.func @transform_6(%arg0: i32) -> (i32, i32) {
    %c0_i32 = arith.constant 0 : i32
    %c0_i32_0 = arith.constant 0 : i32
    %c0_i32_1 = arith.constant 0 : i32
    return %c0_i32, %c0_i32_0 : i32, i32
  }
  func.func @transform_7(%arg0: i32) -> (i32, i32, i32) {
    %c0_i32 = arith.constant 0 : i32
    %c0_i32_0 = arith.constant 0 : i32
    %c0_i32_1 = arith.constant 0 : i32
    return %c0_i32, %arg0, %c0_i32_0 : i32, i32, i32
  }
  func.func @transform_8(%arg0: i32) -> (i32, i32) {
    %c0_i32 = arith.constant 0 : i32
    %c0_i32_0 = arith.constant 0 : i32
    return %arg0, %c0_i32 : i32, i32
  }
}

</mosaic_0001>

<llo_original>
// kernel: mlp_forward.1
$region0: #{mlp_forward.1}
  #allocation0 [shape = 'u32[]', space=smem, size = 0x4, offset = 0x4, fixed_abs, tag = 'smem constant byte address 0x4 - core index']
  #allocation1 [shape = 'u32[144,128]{1,0:T(1,128)}', space=vmem, size = 0x12000, scoped, tag = 'internal scratch']
  %s0 = inlined_call_operand.vmem [shape: bf16[2,8,128], index: 0, kind: input, shape index: {}]
  %s1 = inlined_call_operand.vmem [shape: bf16[128,64], index: 1, kind: input, shape index: {}]
  %s2 = inlined_call_operand.vmem [shape: f32[1,64], index: 2, kind: input, shape index: {}]
  %s3 = inlined_call_operand.vmem [shape: bf16[64,32], index: 3, kind: input, shape index: {}]
  %s4 = inlined_call_operand.vmem [shape: f32[1,32], index: 4, kind: input, shape index: {}]
  %s5 = inlined_call_operand.vmem [shape: bf16[32,4], index: 5, kind: input, shape index: {}]
  %s6 = inlined_call_operand.vmem [shape: f32[1,2], index: 6, kind: input, shape index: {}]
  %s7 = inlined_call_operand.vmem [shape: f32[2,8,32], index: 7, kind: output, shape index: {0}]
  %s8 = inlined_call_operand.vmem [shape: f32[8,2], index: 8, kind: output, shape index: {1}]
  %9 = xla_tuple %s7, %s8
  %s10 = sld [smem:[#allocation0]]
  $region46: #{mlp_forward.1} parent=0
    _
  %s12 = ssub.s32 1, %s10
  %s13 = scalar_select 0, %s12, %s10
  // Predicated region
  $region2: #{mlp_forward.1} parent=0 // pred_check
    _
  $region3: #{mlp_forward.1} parent=0 // pred_check_branch
    %15 = sbr.rel (0) target = $region5
  $region4: #{mlp_forward.1} parent=0 // pred_region
    _
  $region5: #{mlp_forward.1} parent=0 // pred_fallthru
    _
  // Predicated region
  $region6: #{mlp_forward.1} parent=0 // pred_check
    _
  $region7: #{mlp_forward.1} parent=0 // pred_check_branch
    %17 = sbr.rel (0) target = $region9
  $region8: #{mlp_forward.1} parent=0 // pred_region
    _
  $region9: #{mlp_forward.1} parent=0 // pred_fallthru
    _
  // Predicated region
  $region10: #{mlp_forward.1} parent=0 // pred_check
    _
  $region11: #{mlp_forward.1} parent=0 // pred_check_branch
    %19 = sbr.rel (0) target = $region13
  $region12: #{mlp_forward.1} parent=0 // pred_region
    _
  $region13: #{mlp_forward.1} parent=0 // pred_fallthru
    _
  // Predicated region
  $region14: #{mlp_forward.1} parent=0 // pred_check
    _
  $region15: #{mlp_forward.1} parent=0 // pred_check_branch
    %21 = sbr.rel (0) target = $region17
  $region16: #{mlp_forward.1} parent=0 // pred_region
    _
  $region17: #{mlp_forward.1} parent=0 // pred_fallthru
    _
  // Predicated region
  $region18: #{mlp_forward.1} parent=0 // pred_check
    _
  $region19: #{mlp_forward.1} parent=0 // pred_check_branch
    %23 = sbr.rel (0) target = $region21
  $region20: #{mlp_forward.1} parent=0 // pred_region
    _
  $region21: #{mlp_forward.1} parent=0 // pred_fallthru
    _
  // Predicated region
  $region22: #{mlp_forward.1} parent=0 // pred_check
    _
  $region23: #{mlp_forward.1} parent=0 // pred_check_branch
    %25 = sbr.rel (0) target = $region25
  $region24: #{mlp_forward.1} parent=0 // pred_region
    _
  $region25: #{mlp_forward.1} parent=0 // pred_fallthru
    _
  // Predicated region
  $region26: #{mlp_forward.1} parent=0 // pred_check
    _
  $region27: #{mlp_forward.1} parent=0 // pred_check_branch
    %27 = sbr.rel (0) target = $region29
  $region28: #{mlp_forward.1} parent=0 // pred_region
    _
  $region29: #{mlp_forward.1} parent=0 // pred_fallthru
    _
  %v29 = vld [vmem:[%s0] sm:$0xf]
  %v30 = vld [vmem:[%s0 + $0x4] sm:$0xf]
  %v31 = vld [vmem:[%s1] sm:$0xf]
  %v32 = vld [vmem:[%s1 + $0x4] sm:$0xf]
  %v33 = vld [vmem:[%s1 + $0x8] sm:$0xf]
  %v34 = vld [vmem:[%s1 + $0xc] sm:$0xf]
  %v35 = vld [vmem:[%s1 + $0x10] sm:$0xf]
  %v36 = vld [vmem:[%s1 + $0x14] sm:$0xf]
  %v37 = vld [vmem:[%s1 + $0x18] sm:$0xf]
  %v38 = vld [vmem:[%s1 + $0x1c] sm:$0xf]
  %v39 = vld [vmem:[%s1 + $0x20] sm:$0xf]
  %v40 = vld [vmem:[%s1 + $0x24] sm:$0xf]
  %v41 = vld [vmem:[%s1 + $0x28] sm:$0xf]
  %v42 = vld [vmem:[%s1 + $0x2c] sm:$0xf]
  %v43 = vld [vmem:[%s1 + $0x30] sm:$0xf]
  %v44 = vld [vmem:[%s1 + $0x34] sm:$0xf]
  %v45 = vld [vmem:[%s1 + $0x38] sm:$0xf]
  %v46 = vld [vmem:[%s1 + $0x3c] sm:$0xf]
  %v47 = vld [vmem:[%s2] sm:$0x1]
  %v49 = vlaneseq
  %v50 = vshrl.u32 %v49, 7
  %v51 = vsub.s32 0, %v50
  %v52 = vrot.slane %v47, %v51
  %v56 = vunpack.c.l.b16 %v29
  %v57 = vunpack.c.l.b16 %v30
  %v58 = vpack.c.b16 %v57, %v56
  %v76 = vunpack.c.l.b16 %v31
  %v77 = vunpack.c.l.b16 %v32
  %v78 = vunpack.c.l.b16 %v33
  %v79 = vunpack.c.l.b16 %v34
  %v80 = vunpack.c.l.b16 %v35
  %v81 = vunpack.c.l.b16 %v36
  %v82 = vunpack.c.l.b16 %v37
  %v83 = vunpack.c.l.b16 %v38
  %v84 = vunpack.c.l.b16 %v39
  %v85 = vunpack.c.l.b16 %v40
  %v86 = vunpack.c.l.b16 %v41
  %v87 = vunpack.c.l.b16 %v42
  %v88 = vunpack.c.l.b16 %v43
  %v89 = vunpack.c.l.b16 %v44
  %v90 = vunpack.c.l.b16 %v45
  %v91 = vunpack.c.l.b16 %v46
  %v92 = vpack.c.b16 %v77, %v76
  %v93 = vpack.c.b16 %v79, %v78
  %v94 = vpack.c.b16 %v81, %v80
  %v95 = vpack.c.b16 %v83, %v82
  %v96 = vpack.c.b16 %v85, %v84
  %v97 = vpack.c.b16 %v87, %v86
  %v98 = vpack.c.b16 %v89, %v88
  %v99 = vpack.c.b16 %v91, %v90
  %108 = vmatprep.subr.bf16.mxu0 0
  %109 = vmatpush1.bf16.msra.mxu0 %v92
  %110 = vmatprep.subr.bf16.mxu0 0
  %111 = vmatpush1.bf16.msra.mxu0 %v93
  %112 = vmatprep.subr.bf16.mxu0 0
  %113 = vmatpush1.bf16.msra.mxu0 %v94
  %114 = vmatprep.subr.bf16.mxu0 0
  %115 = vmatpush1.bf16.msra.mxu0 %v95
  %116 = vmatprep.subr.bf16.mxu0 0
  %117 = vmatpush1.bf16.msra.mxu0 %v96
  %118 = vmatprep.subr.bf16.mxu0 0
  %119 = vmatpush1.bf16.msra.mxu0 %v97
  %120 = vmatprep.subr.bf16.mxu0 0
  %121 = vmatpush1.bf16.msra.mxu0 %v98
  %122 = vmatprep.subr.bf16.mxu0 0
  %123 = vmatpush1.bf16.msra.mxu0 %v99
  %124 = vmatprep.subr.bf16.mxu0 0
  %125 = vmatpush1.bf16.msra.mxu0 0
  %126 = vmatprep.subr.bf16.mxu0 0
  %127 = vmatpush1.bf16.msra.mxu0 0
  %128 = vmatprep.subr.bf16.mxu0 0
  %129 = vmatpush1.bf16.msra.mxu0 0
  %130 = vmatprep.subr.bf16.mxu0 0
  %131 = vmatpush1.bf16.msra.mxu0 0
  %132 = vmatprep.subr.bf16.mxu0 0
  %133 = vmatpush1.bf16.msra.mxu0 0
  %134 = vmatprep.subr.bf16.mxu0 0
  %135 = vmatpush1.bf16.msra.mxu0 0
  %136 = vmatprep.subr.bf16.mxu0 0
  %137 = vmatpush1.bf16.msra.mxu0 0
  %138 = vmatprep.subr.bf16.mxu0 0
  %139 = vmatpush1.bf16.msra.mxu0 0
  %140 = vmatprep.mubr.bf16.mxu0 0
  %141 = vmatmul.mubr.bf16.gmra.mrb[0].mxu0 %v58
  %v142 = vpop.f32.mrb[0].mxu0
  %v143 = vadd.f32 %v52, %v142
  %v144 = vpop.f32.mrb[0].mxu0
  %v145 = vpop.f32.mrb[0].mxu0
  %v146 = vadd.f32 %v52, %v145
  %v147 = vpop.f32.mrb[0].mxu0
  %148 = vdwg.mxu0
  %v149 = vmax.f32 %v143, 0.0
  %v150 = vmax.f32 %v146, 0.0
  %v151 = vpack.c.bf16 %v150, %v149
  %v152 = vld [vmem:[%s3] sm:$0xf]
  %v153 = vld [vmem:[%s3 + $0x4] sm:$0xf]
  %v154 = vld [vmem:[%s3 + $0x8] sm:$0xf]
  %v155 = vld [vmem:[%s3 + $0xc] sm:$0xf]
  %v156 = vld [vmem:[%s3 + $0x10] sm:$0xf]
  %v157 = vld [vmem:[%s3 + $0x14] sm:$0xf]
  %v158 = vld [vmem:[%s3 + $0x18] sm:$0xf]
  %v159 = vld [vmem:[%s3 + $0x1c] sm:$0xf]
  %v160 = vld [vmem:[%s4] sm:$0x1]
  %v162 = vlaneseq
  %v163 = vshrl.u32 %v162, 7
  %v164 = vsub.s32 0, %v163
  %v165 = vrot.slane %v160, %v164
  %v175 = vunpack.c.l.b16 %v152
  %v176 = vunpack.c.l.b16 %v153
  %v177 = vunpack.c.l.b16 %v154
  %v178 = vunpack.c.l.b16 %v155
  %v179 = vunpack.c.l.b16 %v156
  %v180 = vunpack.c.l.b16 %v157
  %v181 = vunpack.c.l.b16 %v158
  %v182 = vunpack.c.l.b16 %v159
  %v183 = vpack.c.b16 %v176, %v175
  %v184 = vpack.c.b16 %v178, %v177
  %v185 = vpack.c.b16 %v180, %v179
  %v186 = vpack.c.b16 %v182, %v181
  %vm191 = vcmask 523264
  %v193 = vsel %vm191, %v151, 0
  %195 = vmatprep.subr.bf16.mxu0 0
  %196 = vmatpush1.bf16.msra.mxu0 %v183
  %197 = vmatprep.subr.bf16.mxu0 0
  %198 = vmatpush1.bf16.msra.mxu0 %v184
  %199 = vmatprep.subr.bf16.mxu0 0
  %200 = vmatpush1.bf16.msra.mxu0 %v185
  %201 = vmatprep.subr.bf16.mxu0 0
  %202 = vmatpush1.bf16.msra.mxu0 %v186
  %203 = vmatprep.subr.bf16.mxu0 0
  %204 = vmatpush1.bf16.msra.mxu0 0
  %205 = vmatprep.subr.bf16.mxu0 0
  %206 = vmatpush1.bf16.msra.mxu0 0
  %207 = vmatprep.subr.bf16.mxu0 0
  %208 = vmatpush1.bf16.msra.mxu0 0
  %209 = vmatprep.subr.bf16.mxu0 0
  %210 = vmatpush1.bf16.msra.mxu0 0
  %211 = vmatprep.subr.bf16.mxu0 0
  %212 = vmatpush1.bf16.msra.mxu0 0
  %213 = vmatprep.subr.bf16.mxu0 0
  %214 = vmatpush1.bf16.msra.mxu0 0
  %215 = vmatprep.subr.bf16.mxu0 0
  %216 = vmatpush1.bf16.msra.mxu0 0
  %217 = vmatprep.subr.bf16.mxu0 0
  %218 = vmatpush1.bf16.msra.mxu0 0
  %219 = vmatprep.subr.bf16.mxu0 0
  %220 = vmatpush1.bf16.msra.mxu0 0
  %221 = vmatprep.subr.bf16.mxu0 0
  %222 = vmatpush1.bf16.msra.mxu0 0
  %223 = vmatprep.subr.bf16.mxu0 0
  %224 = vmatpush1.bf16.msra.mxu0 0
  %225 = vmatprep.subr.bf16.mxu0 0
  %226 = vmatpush1.bf16.msra.mxu0 0
  %227 = vmatprep.mubr.bf16.mxu0 0
  %228 = vmatmul.mubr.bf16.gmra.mrb[0].mxu0 %v193
  %v229 = vpop.f32.mrb[0].mxu0
  %v230 = vadd.f32 %v165, %v229
  %v231 = vpop.f32.mrb[0].mxu0
  %v232 = vpop.f32.mrb[0].mxu0
  %v233 = vadd.f32 %v165, %v232
  %v234 = vpop.f32.mrb[0].mxu0
  %235 = vdwg.mxu0
  %v236 = vmax.f32 %v230, 0.0
  %v237 = vmax.f32 %v233, 0.0
  %vm238 = vcmask 261120
  %v239 = vsel %vm238, %v236, -inf
  %240 = vmax.xlane.f32.xlu0 %v239
  %v241 = vpop.xlane.xlu0 %240
  %v242 = vsel %vm238, %v237, -inf
  %243 = vmax.xlane.f32.xlu0 %v242
  %v244 = vpop.xlane.xlu0 %243
  %v245 = vsub.f32 %v236, %v241
  %v246 = vsub.f32 %v237, %v244
  %v247 = vmul.f32 %v245, 1.442695
  %v248 = vpow.pop %v247
  %v249 = vmul.f32 %v246, 1.442695
  %v250 = vpow.pop %v249
  %v251 = vsel %vm238, %v248, 0.0
  %252 = vadd.xlane.f32.xlu0 %v251
  %v253 = vpop.xlane.xlu0 %252
  %v254 = vsel %vm238, %v250, 0.0
  %255 = vadd.xlane.f32.xlu0 %v254
  %v256 = vpop.xlane.xlu0 %255
  %v257 = vrcp.pop %v253
  %v258 = vrcp.pop %v256
  %v259 = vmul.f32 %v248, %v257
  %v260 = vmul.f32 %v250, %v258
  %261 = vst.msk [vmem:[%s7] sm:$0xff] %vm238, %v259
  %262 = vst.msk [vmem:[%s7 + $0x8] sm:$0xff] %vm238, %v260
  %v263 = vpack.c.bf16 %v237, %v236
  %v264 = vld [vmem:[%s5] sm:$0xf]
  %v265 = vld [vmem:[%s5 + $0x4] sm:$0xf]
  %v266 = vld [vmem:[%s5 + $0x8] sm:$0xf]
  %v267 = vld [vmem:[%s5 + $0xc] sm:$0xf]
  %v272 = vunpack.c.l.b16 %v264
  %v273 = vunpack.c.l.b16 %v265
  %v274 = vunpack.c.l.b16 %v266
  %v275 = vunpack.c.l.b16 %v267
  %v276 = vpack.c.b16 %v273, %v272
  %v277 = vpack.c.b16 %v275, %v274
  %v281 = vsel %vm238, %v263, 0
  %283 = vmatprep.subr.bf16.mxu0 0
  %284 = vmatpush1.bf16.msra.mxu0 %v276
  %285 = vmatprep.subr.bf16.mxu0 0
  %286 = vmatpush1.bf16.msra.mxu0 %v277
  %287 = vmatprep.subr.bf16.mxu0 0
  %288 = vmatpush1.bf16.msra.mxu0 0
  %289 = vmatprep.subr.bf16.mxu0 0
  %290 = vmatpush1.bf16.msra.mxu0 0
  %291 = vmatprep.subr.bf16.mxu0 0
  %292 = vmatpush1.bf16.msra.mxu0 0
  %293 = vmatprep.subr.bf16.mxu0 0
  %294 = vmatpush1.bf16.msra.mxu0 0
  %295 = vmatprep.subr.bf16.mxu0 0
  %296 = vmatpush1.bf16.msra.mxu0 0
  %297 = vmatprep.subr.bf16.mxu0 0
  %298 = vmatpush1.bf16.msra.mxu0 0
  %299 = vmatprep.subr.bf16.mxu0 0
  %300 = vmatpush1.bf16.msra.mxu0 0
  %301 = vmatprep.subr.bf16.mxu0 0
  %302 = vmatpush1.bf16.msra.mxu0 0
  %303 = vmatprep.subr.bf16.mxu0 0
  %304 = vmatpush1.bf16.msra.mxu0 0
  %305 = vmatprep.subr.bf16.mxu0 0
  %306 = vmatpush1.bf16.msra.mxu0 0
  %307 = vmatprep.subr.bf16.mxu0 0
  %308 = vmatpush1.bf16.msra.mxu0 0
  %309 = vmatprep.subr.bf16.mxu0 0
  %310 = vmatpush1.bf16.msra.mxu0 0
  %311 = vmatprep.subr.bf16.mxu0 0
  %312 = vmatpush1.bf16.msra.mxu0 0
  %313 = vmatprep.subr.bf16.mxu0 0
  %314 = vmatpush1.bf16.msra.mxu0 0
  %315 = vmatprep.mubr.bf16.mxu0 0
  %316 = vmatmul.mubr.bf16.gmra.mrb[0].mxu0 %v281
  %v317 = vpop.f32.mrb[0].mxu0
  %v318 = vadd.f32 0.0, %v317
  %v319 = vpop.f32.mrb[0].mxu0
  %v320 = vpop.f32.mrb[0].mxu0
  %v321 = vadd.f32 0.0, %v320
  %v322 = vpop.f32.mrb[0].mxu0
  %323 = vdwg.mxu0
  %325 = vrot.lane.b32.xlu0 %v321, 126
  %v326 = vpop.permute.xlu0 %325
  %v328 = vadd.f32 %v318, %v326
  %v329 = vld [vmem:[%s6] sm:$0x1]
  %v331 = vlaneseq
  %v332 = vshrl.u32 %v331, 7
  %v333 = vsub.s32 0, %v332
  %v334 = vrot.slane %v329, %v333
  %v336 = vadd.f32 %v328, %v334
  %v337 = vmax.f32 %v336, 0.0
  %vm338 = vcmask 15360
  %v339 = vsel %vm338, %v337, -inf
  %340 = vmax.xlane.f32.xlu0 %v339
  %v341 = vpop.xlane.xlu0 %340
  %v342 = vsub.f32 %v337, %v341
  %v343 = vmul.f32 %v342, 1.442695
  %v344 = vpow.pop %v343
  %v345 = vsel %vm338, %v344, 0.0
  %346 = vadd.xlane.f32.xlu0 %v345
  %v347 = vpop.xlane.xlu0 %346
  %v348 = vrcp.pop %v347
  %v349 = vmul.f32 %v344, %v348
  %350 = vst.msk [vmem:[%s8] sm:$0xff] %vm338, %v349
  // Predicated region
  $region30: #{mlp_forward.1} parent=0 // pred_check
    _
  $region31: #{mlp_forward.1} parent=0 // pred_check_branch
    %352 = sbr.rel (0) target = $region33
  $region32: #{mlp_forward.1} parent=0 // pred_region
    _
  $region33: #{mlp_forward.1} parent=0 // pred_fallthru
    _
  // Predicated region
  $region34: #{mlp_forward.1} parent=0 // pred_check
    _
  $region35: #{mlp_forward.1} parent=0 // pred_check_branch
    %354 = sbr.rel (0) target = $region37
  $region36: #{mlp_forward.1} parent=0 // pred_region
    _
  $region37: #{mlp_forward.1} parent=0 // pred_fallthru
    _
  // Predicated region
  $region38: #{mlp_forward.1} parent=0 // pred_check
    _
  $region39: #{mlp_forward.1} parent=0 // pred_check_branch
    %356 = sbr.rel (0) target = $region41
  $region40: #{mlp_forward.1} parent=0 // pred_region
    _
  $region41: #{mlp_forward.1} parent=0 // pred_fallthru
    _
  // Predicated region
  $region42: #{mlp_forward.1} parent=0 // pred_check
    _
  $region43: #{mlp_forward.1} parent=0 // pred_check_branch
    %358 = sbr.rel (0) target = $region45
  $region44: #{mlp_forward.1} parent=0 // pred_region
    _
  $region45: #{mlp_forward.1} parent=0 // pred_fallthru
    _

</llo_original>
